<compile_context>
chip_gen: v5e
topology: v5e:2x2
jax: 0.10.0
libtpu: 0.0.40
codegen_flags: <defaults>
</compile_context>

<pallas_src>
import math

import jax
import jax.numpy as jnp
from jax.experimental import pallas as pl
from jax.experimental.pallas import tpu as pltpu

# ----------------------------- config ---------------------------------------
B, C, H, W = 2, 4, 16, 16          # small NCHW input
HW = H * W
IN_FEATURES = 32                   # backbone feature dim (stand-in for 2048)
NUM_CLASSES = 8
B_PAD = 8                          # full f32 sublane group
C_PAD = 8                          # channel pad so the GAP matmul K dim is aligned
F_PAD = 128                        # lane-dense padded feature dim
K_PAD = 128                        # lane-dense padded class dim
assert F_PAD == K_PAD              # required by the fused (w_fc | w_arc_t) buffer

ARC_S = 30.0
ARC_M = 0.5
_COS_M = math.cos(ARC_M)
_SIN_M = math.sin(ARC_M)
_TH = math.cos(math.pi - ARC_M)
_MM = math.sin(math.pi - ARC_M) * ARC_M
_EPS = 1e-12


# ----------------------------- kernels --------------------------------------
def _backbone_fc(x, w_proj, b_proj, w_fc, b_fc):
    """Backbone stand-in (in-kernel GAP on the XLU) + projection + fc head.

    x: (B_PAD, C_PAD, HW) f32;  weights already upcast to f32.
    """
    gap = jnp.mean(x, axis=-1)                                           # (B_PAD, C_PAD)
    feats = jnp.dot(gap, w_proj, preferred_element_type=jnp.float32) + b_proj
    return jnp.dot(feats, w_fc, preferred_element_type=jnp.float32) + b_fc


def _logits_kernel(x_ref, wproj_ref, bp_ref, wfc_ref, bfc_ref, out_ref):
    out_ref[...] = _backbone_fc(
        x_ref[...],
        wproj_ref[...].astype(jnp.float32), bp_ref[...],
        wfc_ref[...].astype(jnp.float32), bfc_ref[...])


def _fused_arcface_kernel(x_ref, wproj_ref, bp_ref, wfa_ref, bfc_ref, lab_ref,
                          out_ref):
    """backbone + fc + ArcFace margin, fully fused (single launch).

    wfa_ref is the concatenated (F_PAD, 2*K_PAD) bf16 buffer: [w_fc | w_arc_t].
    """
    wfa = wfa_ref[...]
    w_fc = wfa[:, :K_PAD].astype(jnp.float32)
    w_arc_t = wfa[:, K_PAD:].astype(jnp.float32)

    logits = _backbone_fc(
        x_ref[...],
        wproj_ref[...].astype(jnp.float32), bp_ref[...],
        w_fc, bfc_ref[...])                                              # (B_PAD, K_PAD)

    # ArcFace.  Padded lanes of logits are exactly zero (zero-padded w_fc/b_fc),
    # so normalizing over all 128 lanes equals normalizing over NUM_CLASSES.
    xn = logits * jax.lax.rsqrt(
        jnp.sum(logits * logits, axis=1, keepdims=True) + _EPS)
    cosine = jnp.dot(xn, w_arc_t, preferred_element_type=jnp.float32)
    sine = jnp.sqrt(jnp.clip(1.0 - cosine * cosine, 0.0, 1.0))
    phi = cosine * _COS_M - sine * _SIN_M                  # cos(theta + m)
    phi = jnp.where(cosine > _TH, phi, cosine - _MM)       # numerical guard

    # One-hot via a single VPU compare: labels are a (B_PAD, 1) int32 VMEM input
    # broadcast along lanes against a column iota.
    col_ids = jax.lax.broadcasted_iota(jnp.int32, cosine.shape, 1)
    is_target = col_ids == lab_ref[...]
    out_ref[...] = ARC_S * jnp.where(is_target, phi, cosine)


# ----------------------------- wrappers --------------------------------------
def _pad_input(x_nchw):
    # (B, C, H, W) -> (B_PAD, C_PAD, HW).  The reshape merges trailing dims
    # (metadata-only); the pad is one tiny copy (<= 64 KiB).
    x = x_nchw.astype(jnp.float32).reshape(B, C, HW)
    return jnp.pad(x, ((0, B_PAD - B), (0, C_PAD - C), (0, 0)))


# grid=(1,) — a single fused launch; the lone grid point is independent, so it is
# marked "parallel" (structure ready for batch tiling / v7x dual-TC if dims grow).
_SEMANTICS = pltpu.CompilerParams(dimension_semantics=("parallel",))


def compute_logits(x_nchw, params):
    x3 = _pad_input(x_nchw)
    out = pl.pallas_call(
        _logits_kernel,
        out_shape=jax.ShapeDtypeStruct((B_PAD, K_PAD), jnp.float32),
        grid_spec=pltpu.PrefetchScalarGridSpec(
            num_scalar_prefetch=0,
            grid=(1,),
            in_specs=[
                pl.BlockSpec((B_PAD, C_PAD, HW), lambda i: (0, 0, 0)),
                pl.BlockSpec((C_PAD, F_PAD), lambda i: (0, 0)),
                pl.BlockSpec((1, F_PAD), lambda i: (0, 0)),
                pl.BlockSpec((F_PAD, K_PAD), lambda i: (0, 0)),
                pl.BlockSpec((1, K_PAD), lambda i: (0, 0)),
            ],
            out_specs=pl.BlockSpec((B_PAD, K_PAD), lambda i: (0, 0)),
        ),
        compiler_params=_SEMANTICS,
    )(x3, params["w_proj"], params["b_proj"], params["w_fc"], params["b_fc"])
    return out[:B, :NUM_CLASSES]


def compute_arcface(x_nchw, labels, params):
    x3 = _pad_input(x_nchw)
    lab = jnp.full((B_PAD, 1), -1, jnp.int32).at[:B, 0].set(labels.astype(jnp.int32))
    out = pl.pallas_call(
        _fused_arcface_kernel,
        out_shape=jax.ShapeDtypeStruct((B_PAD, K_PAD), jnp.float32),
        grid_spec=pltpu.PrefetchScalarGridSpec(
            num_scalar_prefetch=0,
            grid=(1,),
            in_specs=[
                pl.BlockSpec((B_PAD, C_PAD, HW), lambda i: (0, 0, 0)),
                pl.BlockSpec((C_PAD, F_PAD), lambda i: (0, 0)),
                pl.BlockSpec((1, F_PAD), lambda i: (0, 0)),
                pl.BlockSpec((F_PAD, 2 * K_PAD), lambda i: (0, 0)),
                pl.BlockSpec((1, K_PAD), lambda i: (0, 0)),
                pl.BlockSpec((B_PAD, 1), lambda i: (0, 0)),
            ],
            out_specs=pl.BlockSpec((B_PAD, K_PAD), lambda i: (0, 0)),
        ),
        compiler_params=_SEMANTICS,
    )(x3, params["w_proj"], params["b_proj"], params["w_fc_arc"], params["b_fc"], lab)
    return out[:B, :NUM_CLASSES]


def nethead_forward(x, params, label=None):
    if label is not None:
        return compute_arcface(x, label, params)
    return compute_logits(x, params)


# ----------------------------- parameters ------------------------------------
def init_raw_params(key):
    """Raw (f32) parameters with the shapes the torch module implies."""
    k1, k2, k3, k4 = jax.random.split(key, 4)
    return {
        "w_proj": jax.random.normal(k1, (C, IN_FEATURES), jnp.float32) * 0.1,
        "b_proj": jnp.zeros((IN_FEATURES,), jnp.float32),
        "w_fc":   jax.random.normal(k2, (IN_FEATURES, NUM_CLASSES), jnp.float32) * 0.1,
        "b_fc":   jax.random.normal(k3, (NUM_CLASSES,), jnp.float32) * 0.01,
        "w_arc":  jax.random.normal(k4, (NUM_CLASSES, NUM_CLASSES), jnp.float32) * 0.1,
    }


def prepare_params(raw):
    """One-time layout prep: zero-pad to lane/sublane-dense widths, pre-normalize
    + pre-transpose the (constant) ArcFace weight, fuse [w_fc | w_arc_t] into one
    buffer, and store all constant weights as bf16 (f32 accumulation in-kernel).

    Exact-zero padding is load-bearing: the in-kernel L2 norm sums over all 128
    lanes and relies on padded logits/cosine lanes being exactly 0.
    """
    w_proj = jnp.zeros((C_PAD, F_PAD), jnp.float32).at[:C, :IN_FEATURES].set(raw["w_proj"])
    b_proj = jnp.pad(raw["b_proj"], (0, F_PAD - IN_FEATURES)).reshape(1, F_PAD)
    w_fc = jnp.pad(raw["w_fc"], ((0, F_PAD - IN_FEATURES), (0, K_PAD - NUM_CLASSES)))
    b_fc = jnp.pad(raw["b_fc"], (0, K_PAD - NUM_CLASSES)).reshape(1, K_PAD)
    # ArcFace weight: row-normalize the TRUE (unpadded) weight, transpose, pad.
    wn = raw["w_arc"] * jax.lax.rsqrt(
        jnp.sum(raw["w_arc"] * raw["w_arc"], axis=1, keepdims=True) + _EPS)
    w_arc_t = jnp.pad(wn.T, ((0, K_PAD - NUM_CLASSES), (0, K_PAD - NUM_CLASSES)))

    w_fc_bf = w_fc.astype(jnp.bfloat16)
    return {
        "w_proj": w_proj.astype(jnp.bfloat16),                       # (C_PAD, F_PAD)
        "b_proj": b_proj,                                            # (1, F_PAD) f32
        "w_fc": w_fc_bf,                                             # (F_PAD, K_PAD)
        "b_fc": b_fc,                                                # (1, K_PAD) f32
        "w_fc_arc": jnp.concatenate(                                 # (F_PAD, 2*K_PAD)
            [w_fc_bf, w_arc_t.astype(jnp.bfloat16)], axis=1),
    }


# ----------------------------- pure-JAX reference -----------------------------
def _q(w):
    """Mirror the kernel's bf16 weight storage so the comparison is apples-to-apples."""
    return w.astype(jnp.bfloat16).astype(jnp.float32)


def nethead_reference(x, raw, label=None):
    hp = jax.lax.Precision.HIGHEST
    gap = jnp.mean(x.astype(jnp.float32), axis=(2, 3))                      # (B, C)
    feats = jnp.dot(gap, _q(raw["w_proj"]), precision=hp) + raw["b_proj"]
    logits = jnp.dot(feats, _q(raw["w_fc"]), precision=hp) + raw["b_fc"]
    if label is None:
        return logits
    xn = logits * jax.lax.rsqrt(jnp.sum(logits * logits, axis=1, keepdims=True) + _EPS)
    wn = raw["w_arc"] * jax.lax.rsqrt(
        jnp.sum(raw["w_arc"] * raw["w_arc"], axis=1, keepdims=True) + _EPS)
    wn = _q(wn)
    cosine = jnp.dot(xn, wn.T, precision=hp)
    sine = jnp.sqrt(jnp.clip(1.0 - cosine * cosine, 0.0, 1.0))
    phi = cosine * _COS_M - sine * _SIN_M
    phi = jnp.where(cosine > _TH, phi, cosine - _MM)
    onehot = jax.nn.one_hot(label, NUM_CLASSES, dtype=jnp.float32)
    return ARC_S * (onehot * phi + (1.0 - onehot) * cosine)


# ----------------------------- main -------------------------------------------
if __name__ == "__main__":
    key = jax.random.PRNGKey(0)
    key_x, key_p = jax.random.split(key)

    x = jax.random.normal(key_x, (B, C, H, W), jnp.float32)
    labels = jnp.arange(B, dtype=jnp.int32) % NUM_CLASSES

    raw = init_raw_params(key_p)
    params = prepare_params(raw)

    # label=None path: backbone + fc logits
    logits = nethead_forward(x, params, label=None)
    # labeled path: backbone + fc + ArcFace margin (single fused kernel)
    arc_out = nethead_forward(x, params, label=labels)

    jax.block_until_ready(logits)
    jax.block_until_ready(arc_out)

    assert logits.shape == (B, NUM_CLASSES)
    assert arc_out.shape == (B, NUM_CLASSES)

    # correctness vs pure-JAX reference (identical bf16-quantized weights, f32 math)
    ref_logits = nethead_reference(x, raw, label=None)
    ref_arc = nethead_reference(x, raw, label=labels)
    assert jnp.allclose(logits, ref_logits, atol=1e-3, rtol=1e-3), (
        "logits mismatch: max_err=%g" % float(jnp.max(jnp.abs(logits - ref_logits))))
    assert jnp.allclose(arc_out, ref_arc, atol=1e-3, rtol=1e-3), (
        "arcface mismatch: max_err=%g" % float(jnp.max(jnp.abs(arc_out - ref_arc))))

    print("KERNEL_OK")
</pallas_src>

<mosaic_0001>
module attributes {stable_mosaic.version = 11 : i64} {
  func.func @_logits_kernel(%arg0: i32, %arg1: memref<8x8x256xf32, #tpu.memory_space<vmem>>, %arg2: memref<8x128xbf16, #tpu.memory_space<vmem>>, %arg3: memref<1x128xf32, #tpu.memory_space<vmem>>, %arg4: memref<128x128xbf16, #tpu.memory_space<vmem>>, %arg5: memref<1x128xf32, #tpu.memory_space<vmem>>, %arg6: memref<8x128xf32, #tpu.memory_space<vmem>>) attributes {dimension_semantics = [#tpu.dimension_semantics<parallel>], iteration_bounds = array<i64: 1>, scalar_prefetch = 0 : i64, scratch_operands = 0 : i64, tpu.core_type = #tpu.core_type<tc>, window_params = [{pipeline_mode = #tpu.pipeline_mode<synchronous>, transform_indices = @transform_0, window_bounds = array<i64: 8, 8, 256>}, {pipeline_mode = #tpu.pipeline_mode<synchronous>, transform_indices = @transform_1, window_bounds = array<i64: 8, 128>}, {pipeline_mode = #tpu.pipeline_mode<synchronous>, transform_indices = @transform_2, window_bounds = array<i64: 1, 128>}, {pipeline_mode = #tpu.pipeline_mode<synchronous>, transform_indices = @transform_3, window_bounds = array<i64: 128, 128>}, {pipeline_mode = #tpu.pipeline_mode<synchronous>, transform_indices = @transform_4, window_bounds = array<i64: 1, 128>}, {pipeline_mode = #tpu.pipeline_mode<synchronous>, transform_indices = @transform_5, window_bounds = array<i64: 8, 128>}]} {
    %c0 = arith.constant 0 : index
    %c0_0 = arith.constant 0 : index
    %c0_1 = arith.constant 0 : index
    %0 = vector.load %arg1[%c0, %c0_0, %c0_1] : memref<8x8x256xf32, #tpu.memory_space<vmem>>, vector<8x8x256xf32>
    %c0_2 = arith.constant 0 : index
    %c0_3 = arith.constant 0 : index
    %1 = vector.load %arg2[%c0_2, %c0_3] : memref<8x128xbf16, #tpu.memory_space<vmem>>, vector<8x128xbf16>
    %2 = arith.extf %1 : vector<8x128xbf16> to vector<8x128xf32>
    %c0_4 = arith.constant 0 : index
    %c0_5 = arith.constant 0 : index
    %3 = vector.load %arg3[%c0_4, %c0_5] : memref<1x128xf32, #tpu.memory_space<vmem>>, vector<1x128xf32>
    %c0_6 = arith.constant 0 : index
    %c0_7 = arith.constant 0 : index
    %4 = vector.load %arg4[%c0_6, %c0_7] : memref<128x128xbf16, #tpu.memory_space<vmem>>, vector<128x128xbf16>
    %5 = arith.extf %4 : vector<128x128xbf16> to vector<128x128xf32>
    %c0_8 = arith.constant 0 : index
    %c0_9 = arith.constant 0 : index
    %6 = vector.load %arg5[%c0_8, %c0_9] : memref<1x128xf32, #tpu.memory_space<vmem>>, vector<1x128xf32>
    %cst = arith.constant dense<0.000000e+00> : vector<8x8xf32>
    %7 = vector.multi_reduction <add>, %0, %cst [2] : vector<8x8x256xf32> to vector<8x8xf32>
    %cst_10 = arith.constant 2.560000e+02 : f32
    %8 = vector.broadcast %cst_10 : f32 to vector<8x8xf32>
    %9 = arith.divf %7, %8 : vector<8x8xf32>
    %cst_11 = arith.constant dense<0.000000e+00> : vector<8x128xf32>
    %10 = tpu.matmul %9, %2, %cst_11 {dimension_numbers = #tpu.dot_dimension_numbers<[1], [0], [0], [1], [0, 0, 1, 1], [], []>} : vector<8x8xf32>, vector<8x128xf32>, vector<8x128xf32> -> vector<8x128xf32>
    %11 = vector.broadcast %3 : vector<1x128xf32> to vector<8x128xf32>
    %12 = arith.addf %10, %11 : vector<8x128xf32>
    %cst_12 = arith.constant dense<0.000000e+00> : vector<8x128xf32>
    %13 = tpu.matmul %12, %5, %cst_12 {dimension_numbers = #tpu.dot_dimension_numbers<[1], [0], [0], [1], [0, 0, 1, 1], [], []>} : vector<8x128xf32>, vector<128x128xf32>, vector<8x128xf32> -> vector<8x128xf32>
    %14 = vector.broadcast %6 : vector<1x128xf32> to vector<8x128xf32>
    %15 = arith.addf %13, %14 : vector<8x128xf32>
    %c0_13 = arith.constant 0 : index
    %c0_14 = arith.constant 0 : index
    %16 = vector.load %arg6[%c0_13, %c0_14] : memref<8x128xf32, #tpu.memory_space<vmem>>, vector<8x128xf32>
    tpu.vector_store %arg6[%c0_13, %c0_14], %15 {strides = array<i32>} : memref<8x128xf32, #tpu.memory_space<vmem>>, vector<8x128xf32>,
    return
  }
  func.func @transform_0(%arg0: i32) -> (i32, i32, i32) {
    %c0_i32 = arith.constant 0 : i32
    %c0_i32_0 = arith.constant 0 : i32
    %c0_i32_1 = arith.constant 0 : i32
    %c0_i32_2 = arith.constant 0 : i32
    return %c0_i32, %c0_i32_0, %c0_i32_1 : i32, i32, i32
  }
  func.func @transform_1(%arg0: i32) -> (i32, i32) {
    %c0_i32 = arith.constant 0 : i32
    %c0_i32_0 = arith.constant 0 : i32
    %c0_i32_1 = arith.constant 0 : i32
    return %c0_i32, %c0_i32_0 : i32, i32
  }
  func.func @transform_2(%arg0: i32) -> (i32, i32) {
    %c0_i32 = arith.constant 0 : i32
    %c0_i32_0 = arith.constant 0 : i32
    %c0_i32_1 = arith.constant 0 : i32
    return %c0_i32, %c0_i32_0 : i32, i32
  }
  func.func @transform_3(%arg0: i32) -> (i32, i32) {
    %c0_i32 = arith.constant 0 : i32
    %c0_i32_0 = arith.constant 0 : i32
    %c0_i32_1 = arith.constant 0 : i32
    return %c0_i32, %c0_i32_0 : i32, i32
  }
  func.func @transform_4(%arg0: i32) -> (i32, i32) {
    %c0_i32 = arith.constant 0 : i32
    %c0_i32_0 = arith.constant 0 : i32
    %c0_i32_1 = arith.constant 0 : i32
    return %c0_i32, %c0_i32_0 : i32, i32
  }
  func.func @transform_5(%arg0: i32) -> (i32, i32) {
    %c0_i32 = arith.constant 0 : i32
    %c0_i32_0 = arith.constant 0 : i32
    %c0_i32_1 = arith.constant 0 : i32
    return %c0_i32, %c0_i32_0 : i32, i32
  }
}

</mosaic_0001>

<llo_original>
// kernel: tpu_custom_call.1
$region0: #{tpu_custom_call.1}
  #allocation0 [shape = 'u32[]', space=smem, size = 0x4, offset = 0x4, fixed_abs, tag = 'smem constant byte address 0x4 - core index']
  #allocation1 [shape = 'u32[72,128]{1,0:T(1,128)}', space=vmem, size = 0x9000, scoped, tag = 'internal scratch']
  %s0 = inlined_call_operand.hbm [shape: f32[8,8,256], index: 0, kind: input, shape index: {}]
  %s1 = inlined_call_operand.hbm [shape: bf16[8,128], index: 1, kind: input, shape index: {}]
  %s2 = inlined_call_operand.vmem [shape: f32[1,128], index: 2, kind: input, shape index: {}]
  %s3 = inlined_call_operand.hbm [shape: bf16[128,128], index: 3, kind: input, shape index: {}]
  %s4 = inlined_call_operand.vmem [shape: f32[1,128], index: 4, kind: input, shape index: {}]
  %s5 = inlined_call_operand.hbm [shape: f32[8,128], index: 5, kind: output, shape index: {}]
  %s6 = sld [smem:[#allocation0]]
  $region42: #{tpu_custom_call.1} parent=0
    _
  %s8 = ssub.s32 1, %s6
  %s9 = scalar_select 0, %s8, %s6
  $region1: #{tpu_custom_call.1} parent=0
    #allocation2 [shape = 'u8[65536]{0}', space=vmem, size = 0x10000, scoped, tag = 'input window, operand 0, single buffered']
    #allocation3 [shape = 's32[1]{0}', space=sflag, size = 0x4, scoped, tag = 'scoped memory for tpu_custom_call.1']
    #allocation4 [shape = 's32[1]{0}', space=sflag, size = 0x4, scoped, tag = 'scoped memory for tpu_custom_call.1']
    #allocation5 [shape = 'u8[2048]{0}', space=vmem, size = 0x800, scoped, tag = 'input window, operand 1, single buffered']
    #allocation6 [shape = 's32[1]{0}', space=sflag, size = 0x4, scoped, tag = 'scoped memory for tpu_custom_call.1']
    #allocation7 [shape = 'u8[32768]{0}', space=vmem, size = 0x8000, scoped, tag = 'input window, operand 3, single buffered']
    #allocation8 [shape = 'u8[4096]{0}', space=vmem, size = 0x1000, scoped, tag = 'output window, operand 0, single buffered']
    %10 = vsyncpa [#allocation3], 0
    %11 = vsyncpa [#allocation6], 0
    %12 = vsyncpa [#allocation4], 0
    // Predicated region
    $region2: #{tpu_custom_call.1} parent=1 // pred_check
      _
    $region3: #{tpu_custom_call.1} parent=1 // pred_check_branch
      %14 = sbr.rel (0) target = $region5
    $region4: #{tpu_custom_call.1} parent=1 // pred_region
      %16 = vsyncadd [#allocation3], 0
      %s17 = sshll.u32 %s0, 4
      %s18 = int_to_ptr.hbm [resolvable:$true] %s17
      %s19 = sshll.u32 [#allocation2], 4
      %s20 = int_to_ptr.vmem [resolvable:$true] %s19
      %25 = dma.hbm_to_vmem [thread:$0]  %s18, 2048, %s20, [#allocation3], 256, 256, 16
    $region5: #{tpu_custom_call.1} parent=1 // pred_fallthru
      _
    // Predicated region
    $region6: #{tpu_custom_call.1} parent=1 // pred_check
      _
    $region7: #{tpu_custom_call.1} parent=1 // pred_check_branch
      %27 = sbr.rel (0) target = $region9
    $region8: #{tpu_custom_call.1} parent=1 // pred_region
      %29 = vsyncadd [#allocation6], 0
      %s31 = sshll.u32 %s1, 4
      %s32 = int_to_ptr.hbm [resolvable:$true] %s31
      %s33 = sshll.u32 [#allocation5], 4
      %s34 = int_to_ptr.vmem [resolvable:$true] %s33
      %36 = dma.hbm_to_vmem [thread:$0]  %s32, 64, %s34, [#allocation6]
    $region9: #{tpu_custom_call.1} parent=1 // pred_fallthru
      _
    // Predicated region
    $region10: #{tpu_custom_call.1} parent=1 // pred_check
      _
    $region11: #{tpu_custom_call.1} parent=1 // pred_check_branch
      %38 = sbr.rel (0) target = $region13
    $region12: #{tpu_custom_call.1} parent=1 // pred_region
      _
    $region13: #{tpu_custom_call.1} parent=1 // pred_fallthru
      _
    // Predicated region
    $region14: #{tpu_custom_call.1} parent=1 // pred_check
      _
    $region15: #{tpu_custom_call.1} parent=1 // pred_check_branch
      %40 = sbr.rel (0) target = $region17
    $region16: #{tpu_custom_call.1} parent=1 // pred_region
      %42 = vsyncadd [#allocation6], 0
      %s43 = sshll.u32 %s3, 4
      %s44 = int_to_ptr.hbm [resolvable:$true] %s43
      %s45 = sshll.u32 [#allocation7], 4
      %s46 = int_to_ptr.vmem [resolvable:$true] %s45
      %51 = dma.hbm_to_vmem [thread:$0]  %s44, 1024, %s46, [#allocation6], 64, 64, 4
    $region17: #{tpu_custom_call.1} parent=1 // pred_fallthru
      _
    // Predicated region
    $region18: #{tpu_custom_call.1} parent=1 // pred_check
      _
    $region19: #{tpu_custom_call.1} parent=1 // pred_check_branch
      %53 = sbr.rel (0) target = $region21
    $region20: #{tpu_custom_call.1} parent=1 // pred_region
      _
    $region21: #{tpu_custom_call.1} parent=1 // pred_fallthru
      _
    // Predicated region
    $region22: #{tpu_custom_call.1} parent=1 // pred_check
      _
    $region23: #{tpu_custom_call.1} parent=1 // pred_check_branch
      %55 = sbr.rel (0) target = $region25
    $region24: #{tpu_custom_call.1} parent=1 // pred_region
      %57 = dma.done [#allocation3], 2048
    $region25: #{tpu_custom_call.1} parent=1 // pred_fallthru
      _
    // Predicated region
    $region26: #{tpu_custom_call.1} parent=1 // pred_check
      _
    $region27: #{tpu_custom_call.1} parent=1 // pred_check_branch
      %59 = sbr.rel (0) target = $region29
    $region28: #{tpu_custom_call.1} parent=1 // pred_region
      %61 = dma.done [#allocation6], 64
    $region29: #{tpu_custom_call.1} parent=1 // pred_fallthru
      _
    // Predicated region
    $region30: #{tpu_custom_call.1} parent=1 // pred_check
      _
    $region31: #{tpu_custom_call.1} parent=1 // pred_check_branch
      %63 = sbr.rel (0) target = $region33
    $region32: #{tpu_custom_call.1} parent=1 // pred_region
      %65 = dma.done [#allocation6], 1024
    $region33: #{tpu_custom_call.1} parent=1 // pred_fallthru
      _
    %v66 = vld [vmem:[#allocation2] sm:$0xff]
    %v67 = vld [vmem:[#allocation2 + $0x8] sm:$0xff]
    %v68 = vld [vmem:[#allocation2 + $0x10] sm:$0xff]
    %v69 = vld [vmem:[#allocation2 + $0x18] sm:$0xff]
    %v70 = vld [vmem:[#allocation2 + $0x20] sm:$0xff]
    %v71 = vld [vmem:[#allocation2 + $0x28] sm:$0xff]
    %v72 = vld [vmem:[#allocation2 + $0x30] sm:$0xff]
    %v73 = vld [vmem:[#allocation2 + $0x38] sm:$0xff]
    %v74 = vld [vmem:[#allocation2 + $0x40] sm:$0xff]
    %v75 = vld [vmem:[#allocation2 + $0x48] sm:$0xff]
    %v76 = vld [vmem:[#allocation2 + $0x50] sm:$0xff]
    %v77 = vld [vmem:[#allocation2 + $0x58] sm:$0xff]
    %v78 = vld [vmem:[#allocation2 + $0x60] sm:$0xff]
    %v79 = vld [vmem:[#allocation2 + $0x68] sm:$0xff]
    %v80 = vld [vmem:[#allocation2 + $0x70] sm:$0xff]
    %v81 = vld [vmem:[#allocation2 + $0x78] sm:$0xff]
    %v82 = vld [vmem:[#allocation5] sm:$0xf]
    %v83 = vunpack.c.l.bf16 %v82
    %v84 = vld [vmem:[%s2] sm:$0x1]
    %v85 = vld [vmem:[#allocation7] sm:$0xf]
    %v86 = vld [vmem:[#allocation7 + $0x4] sm:$0xf]
    %v87 = vld [vmem:[#allocation7 + $0x8] sm:$0xf]
    %v88 = vld [vmem:[#allocation7 + $0xc] sm:$0xf]
    %v89 = vld [vmem:[#allocation7 + $0x10] sm:$0xf]
    %v90 = vld [vmem:[#allocation7 + $0x14] sm:$0xf]
    %v91 = vld [vmem:[#allocation7 + $0x18] sm:$0xf]
    %v92 = vld [vmem:[#allocation7 + $0x1c] sm:$0xf]
    %v93 = vld [vmem:[#allocation7 + $0x20] sm:$0xf]
    %v94 = vld [vmem:[#allocation7 + $0x24] sm:$0xf]
    %v95 = vld [vmem:[#allocation7 + $0x28] sm:$0xf]
    %v96 = vld [vmem:[#allocation7 + $0x2c] sm:$0xf]
    %v97 = vld [vmem:[#allocation7 + $0x30] sm:$0xf]
    %v98 = vld [vmem:[#allocation7 + $0x34] sm:$0xf]
    %v99 = vld [vmem:[#allocation7 + $0x38] sm:$0xf]
    %v100 = vld [vmem:[#allocation7 + $0x3c] sm:$0xf]
    %v101 = vunpack.c.l.bf16 %v85
    %v102 = vunpack.c.l.bf16 %v86
    %v103 = vunpack.c.l.bf16 %v87
    %v104 = vunpack.c.l.bf16 %v88
    %v105 = vunpack.c.l.bf16 %v89
    %v106 = vunpack.c.l.bf16 %v90
    %v107 = vunpack.c.l.bf16 %v91
    %v108 = vunpack.c.l.bf16 %v92
    %v109 = vunpack.c.l.bf16 %v93
    %v110 = vunpack.c.l.bf16 %v94
    %v111 = vunpack.c.l.bf16 %v95
    %v112 = vunpack.c.l.bf16 %v96
    %v113 = vunpack.c.l.bf16 %v97
    %v114 = vunpack.c.l.bf16 %v98
    %v115 = vunpack.c.l.bf16 %v99
    %v116 = vunpack.c.l.bf16 %v100
    %v117 = vld [vmem:[%s4] sm:$0x1]
    %v118 = vadd.f32 %v66, %v67
    %119 = vadd.xlane.f32.xlu0 %v118
    %v120 = vpop.xlane.xlu0 %119
    %v121 = vadd.f32 %v68, %v69
    %122 = vadd.xlane.f32.xlu0 %v121
    %v123 = vpop.xlane.xlu0 %122
    %v124 = vadd.f32 %v70, %v71
    %125 = vadd.xlane.f32.xlu0 %v124
    %v126 = vpop.xlane.xlu0 %125
    %v127 = vadd.f32 %v72, %v73
    %128 = vadd.xlane.f32.xlu0 %v127
    %v129 = vpop.xlane.xlu0 %128
    %v130 = vadd.f32 %v74, %v75
    %131 = vadd.xlane.f32.xlu0 %v130
    %v132 = vpop.xlane.xlu0 %131
    %v133 = vadd.f32 %v76, %v77
    %134 = vadd.xlane.f32.xlu0 %v133
    %v135 = vpop.xlane.xlu0 %134
    %v136 = vadd.f32 %v78, %v79
    %137 = vadd.xlane.f32.xlu0 %v136
    %v138 = vpop.xlane.xlu0 %137
    %v139 = vadd.f32 %v80, %v81
    %140 = vadd.xlane.f32.xlu0 %v139
    %v141 = vpop.xlane.xlu0 %140
    %v142 = vrcp.pop 256.0
    %v143 = vmul.f32 256.0, %v142
    %v144 = vsub.f32 1.0, %v143
    %v145 = vmul.f32 %v142, %v144
    %v146 = vadd.f32 %v142, %v145
    %vm147 = vweird.f32 %v142
    %v148 = vsel %vm147, %v142, %v146
    %v149 = vmul.f32 %v120, %v148
    %v150 = vmul.f32 %v123, %v148
    %v151 = vmul.f32 %v126, %v148
    %v152 = vmul.f32 %v129, %v148
    %v153 = vmul.f32 %v132, %v148
    %v154 = vmul.f32 %v135, %v148
    %v155 = vmul.f32 %v138, %v148
    %v156 = vmul.f32 %v141, %v148
    %v158 = vperm.slane %v84, 0
    %v168 = vlaneseq
    %v169 = vand.u32 %v168, 127
    %v170 = vperm.slane %v149, %v169
    %v171 = vperm.slane %v150, %v169
    %v172 = vperm.slane %v151, %v169
    %v173 = vperm.slane %v152, %v169
    %v174 = vperm.slane %v153, %v169
    %v175 = vperm.slane %v154, %v169
    %v176 = vperm.slane %v155, %v169
    %v177 = vperm.slane %v156, %v169
    %vm178 = vcmask 1041409
    %v179 = vsel %vm178, %v171, %v170
    %vm180 = vcmask 1042434
    %v181 = vsel %vm180, %v172, %v179
    %vm182 = vcmask 1043459
    %v183 = vsel %vm182, %v173, %v181
    %vm184 = vcmask 1044484
    %v185 = vsel %vm184, %v174, %v183
    %vm186 = vcmask 1045509
    %v187 = vsel %vm186, %v175, %v185
    %vm188 = vcmask 1046534
    %v189 = vsel %vm188, %v176, %v187
    %vm190 = vcmask 1047559
    %v191 = vsel %vm190, %v177, %v189
    %vm192 = vcmask 64512
    %v193 = vsel %vm192, %v191, 0
    %195 = vmatpush.msra.mxu0 0.0
    %196 = vmatpush.msra.mxu0 0.0
    %197 = vmatpush.msra.mxu0 0.0
    %198 = vmatpush.msra.mxu0 0.0
    %199 = vmatpush.msra.mxu0 0.0
    %200 = vmatpush.msra.mxu0 0.0
    %201 = vmatpush.msra.mxu0 0.0
    %202 = vmatpush.msra.mxu0 0.0
    %203 = vmatpush.msra.mxu0 0.0
    %204 = vmatpush.msra.mxu0 0.0
    %205 = vmatpush.msra.mxu0 0.0
    %206 = vmatpush.msra.mxu0 0.0
    %207 = vmatpush.msra.mxu0 0.0
    %208 = vmatpush.msra.mxu0 0.0
    %209 = vmatpush.msra.mxu0 0.0
    %210 = vmatpush.msra.mxu0 %v83
    %211 = vmatmul.f32.gmra.mxu0 %v193
    %v212 = vpop.f32.mrf.mxu0
    %v213 = vadd.f32 %v158, %v212
    %214 = vdwg.mxu0
    %v216 = vperm.slane %v117, 0
    %218 = vmatpush.msra.mxu0 %v116
    %219 = vmatpush.msra.mxu0 %v115
    %220 = vmatpush.msra.mxu0 %v114
    %221 = vmatpush.msra.mxu0 %v113
    %222 = vmatpush.msra.mxu0 %v112
    %223 = vmatpush.msra.mxu0 %v111
    %224 = vmatpush.msra.mxu0 %v110
    %225 = vmatpush.msra.mxu0 %v109
    %226 = vmatpush.msra.mxu0 %v108
    %227 = vmatpush.msra.mxu0 %v107
    %228 = vmatpush.msra.mxu0 %v106
    %229 = vmatpush.msra.mxu0 %v105
    %230 = vmatpush.msra.mxu0 %v104
    %231 = vmatpush.msra.mxu0 %v103
    %232 = vmatpush.msra.mxu0 %v102
    %233 = vmatpush.msra.mxu0 %v101
    %234 = vmatmul.f32.gmra.mxu0 %v213
    %v235 = vpop.f32.mrf.mxu0
    %v236 = vadd.f32 %v216, %v235
    %237 = vdwg.mxu0
    %238 = vst [vmem:[#allocation8] sm:$0xff] %v236
    // Predicated region
    $region34: #{tpu_custom_call.1} parent=1 // pred_check
      _
    $region35: #{tpu_custom_call.1} parent=1 // pred_check_branch
      %240 = sbr.rel (0) target = $region37
    $region36: #{tpu_custom_call.1} parent=1 // pred_region
      %242 = vsyncadd [#allocation4], 0
      %s244 = sshll.u32 [#allocation8], 4
      %s245 = int_to_ptr.vmem [resolvable:$true] %s244
      %s246 = sshll.u32 %s5, 4
      %s247 = int_to_ptr.hbm [resolvable:$true] %s246
      %249 = dma.vmem_to_hbm [thread:$0]  %s245, 128, %s247, [#allocation4]
    $region37: #{tpu_custom_call.1} parent=1 // pred_fallthru
      _
    // Predicated region
    $region38: #{tpu_custom_call.1} parent=1 // pred_check
      _
    $region39: #{tpu_custom_call.1} parent=1 // pred_check_branch
      %251 = sbr.rel (0) target = $region41
    $region40: #{tpu_custom_call.1} parent=1 // pred_region
      %253 = dma.done [#allocation4], 128
    $region41: #{tpu_custom_call.1} parent=1 // pred_fallthru
      _
    %254 = vsyncpa [#allocation3], 1
    %255 = vsyncpa [#allocation6], 1
    %256 = vsyncpa [#allocation4], 1

</llo_original>
